<compile_context>
chip_gen: v5e
topology: v5e:2x2
jax: 0.10.0
libtpu: 0.0.40
codegen_flags: <defaults>
</compile_context>

<pallas_src>
import functools

import jax
import jax.numpy as jnp
from jax.experimental import pallas as pl
from jax.experimental.pallas import tpu as pltpu

# Tile caps (bf16 operands, f32 output).  Worst-case double-buffered VMEM:
#   2 * (tm*tk*2 + tk*tn*2 + tm*tn*4 + tn*4)  ~= 10 MiB
# which fits under every generation's scoped-VMEM budget (v5e 16 MiB scoped
# default, v6e/v7x 32 MiB scoped default, v7x 64 MiB/TC physical).
_TM_CAP = 512
_TN_CAP = 1024
_TK_CAP = 1024
_VMEM_LIMIT = 32 << 20


def _round_up(x: int, m: int) -> int:
    return (x + m - 1) // m * m


def _ceil_div(x: int, m: int) -> int:
    return (x + m - 1) // m


def _pick_row_tile(b: int, cap: int, align: int = 16) -> int:
    """Row (sublane) tile: multiple of `align`, <= ~cap, minimal padding waste."""
    b_a = _round_up(max(b, 1), align)
    if b_a <= cap:
        return b_a
    n_tiles = _ceil_div(b_a, cap)
    return _round_up(_ceil_div(b_a, n_tiles), align)


def _pick_divisor_tile(padded_dim: int, cap: int, align: int = 128) -> int:
    """Largest tile that is a multiple of `align`, divides `padded_dim` exactly
    and is <= cap.  `padded_dim` is already a multiple of `align`, so `align`
    itself is always a valid fallback."""
    for n_tiles in range(1, padded_dim // align + 1):
        if padded_dim % n_tiles:
            continue
        t = padded_dim // n_tiles
        if t % align == 0 and t <= cap:
            return t
    return align


# ---------------------------------------------------------------------------
# Kernels
# ---------------------------------------------------------------------------
def _linear_kernel_single_k(x_ref, w_ref, b_ref, o_ref):
    """Whole K in one block: fused matmul + bias + cast, no reduction loop."""
    o_ref[...] = (
        jnp.dot(x_ref[...], w_ref[...], preferred_element_type=jnp.float32)
        + b_ref[...]
    ).astype(o_ref.dtype)


def _linear_kernel_acc_in_out(x_ref, w_ref, b_ref, o_ref):
    """K-reduction, float32 output: accumulate straight into the resident
    output block (no VMEM scratch, no epilogue copy)."""
    k = pl.program_id(2)

    @pl.when(k == 0)
    def _():
        o_ref[...] = jnp.zeros_like(o_ref)

    o_ref[...] += jnp.dot(
        x_ref[...], w_ref[...], preferred_element_type=jnp.float32
    )

    @pl.when(k == pl.num_programs(2) - 1)
    def _():
        o_ref[...] = o_ref[...] + b_ref[...]


def _linear_kernel_scratch_acc(x_ref, w_ref, b_ref, o_ref, acc_ref):
    """K-reduction, non-f32 output: f32 scratch accumulator, downcast once."""
    k = pl.program_id(2)

    @pl.when(k == 0)
    def _():
        acc_ref[...] = jnp.zeros_like(acc_ref)

    acc_ref[...] += jnp.dot(
        x_ref[...], w_ref[...], preferred_element_type=jnp.float32
    )

    @pl.when(k == pl.num_programs(2) - 1)
    def _():
        o_ref[...] = (acc_ref[...] + b_ref[...]).astype(o_ref.dtype)


# ---------------------------------------------------------------------------
# Wrappers
# ---------------------------------------------------------------------------
def prepare_linear_params(w, b):
    """One-time parameter prep (call at load time, NOT per forward step):
    W [Dout, Din] -> W^T bf16 padded to 128-multiples, bias -> f32 [1, N]."""
    Dout, Din = w.shape
    K = _round_up(Din, 128)
    N = _round_up(Dout, 128)
    w_p = jnp.pad(w.T.astype(jnp.bfloat16), ((0, K - Din), (0, N - Dout)))
    b_p = jnp.pad(b.astype(jnp.float32), (0, N - Dout)).reshape(1, N)
    return jax.device_put(w_p), jax.device_put(b_p)


@functools.partial(jax.jit, static_argnames=("dout", "out_dtype"))
def linear_forward(x, w_p, b_p, *, dout, out_dtype=jnp.float32):
    """y = x @ W^T + b with pre-prepared params.

    x:   [B, Din]   (any float dtype; cast to bf16 for the MXU)
    w_p: [K, N]     bf16, K = round_up(Din, 128), N = round_up(Dout, 128)
    b_p: [1, N]     f32
    returns [B, dout] in out_dtype.
    """
    B, Din = x.shape
    K, N = w_p.shape
    assert b_p.shape == (1, N)
    assert K >= Din and N >= dout
    out_dt = jnp.dtype(out_dtype)

    # --- tile selection ----------------------------------------------------
    tm = _pick_row_tile(B, _TM_CAP)          # B<=512 -> single row tile: the
    M = _round_up(B, tm)                     # weight is DMA'd exactly once.
    tn = _pick_divisor_tile(N, _TN_CAP)
    tk = _pick_divisor_tile(K, _TK_CAP)
    n_i = M // tm
    # v7x megacore: if the parallel grid would be a single tile and N splits
    # evenly (no extra padding), split N so both TensorCores get work.
    if n_i == 1 and N // tn == 1 and N % 256 == 0:
        tn = N // 2
    n_j = N // tn
    n_k = K // tk

    # Activations: cast + zero-pad per call (cheap; weight is NOT touched).
    x_p = jnp.pad(x.astype(jnp.bfloat16), ((0, M - B), (0, K - Din)))

    cost = pl.CostEstimate(
        flops=2 * M * N * K,
        transcendentals=0,
        bytes_accessed=(M * K * 2) * n_j        # x re-read once per N tile
        + (K * N * 2) * n_i                     # w re-read once per M tile
        + (N * 4) * n_i                         # bias
        + M * N * out_dt.itemsize,              # output writeback
    )
    compiler_params = pltpu.CompilerParams(
        dimension_semantics=(
            ("parallel", "parallel") if n_k == 1
            else ("parallel", "parallel", "arbitrary")
        ),
        vmem_limit_bytes=_VMEM_LIMIT,
    )

    if n_k == 1:
        # Fast path: no reduction loop, no scratch, no init/finalize phases.
        out = pl.pallas_call(
            _linear_kernel_single_k,
            out_shape=jax.ShapeDtypeStruct((M, N), out_dt),
            grid_spec=pltpu.PrefetchScalarGridSpec(
                num_scalar_prefetch=0,
                grid=(n_i, n_j),
                in_specs=[
                    pl.BlockSpec((tm, K), lambda i, j: (i, 0)),   # x tile
                    pl.BlockSpec((K, tn), lambda i, j: (0, j)),   # w^T tile
                    pl.BlockSpec((1, tn), lambda i, j: (0, j)),   # bias tile
                ],
                out_specs=pl.BlockSpec((tm, tn), lambda i, j: (i, j)),
            ),
            compiler_params=compiler_params,
            cost_estimate=cost,
        )(x_p, w_p, b_p)
    elif out_dt == jnp.dtype(jnp.float32):
        # K-reduction with f32 output: accumulate into the resident out block.
        out = pl.pallas_call(
            _linear_kernel_acc_in_out,
            out_shape=jax.ShapeDtypeStruct((M, N), out_dt),
            grid_spec=pltpu.PrefetchScalarGridSpec(
                num_scalar_prefetch=0,
                grid=(n_i, n_j, n_k),
                in_specs=[
                    pl.BlockSpec((tm, tk), lambda i, j, k: (i, k)),
                    pl.BlockSpec((tk, tn), lambda i, j, k: (k, j)),
                    pl.BlockSpec((1, tn), lambda i, j, k: (0, j)),  # k-invariant
                ],
                out_specs=pl.BlockSpec((tm, tn), lambda i, j, k: (i, j)),
            ),
            compiler_params=compiler_params,
            cost_estimate=cost,
        )(x_p, w_p, b_p)
    else:
        # K-reduction with non-f32 output: f32 scratch accumulator.
        out = pl.pallas_call(
            _linear_kernel_scratch_acc,
            out_shape=jax.ShapeDtypeStruct((M, N), out_dt),
            grid_spec=pltpu.PrefetchScalarGridSpec(
                num_scalar_prefetch=0,
                grid=(n_i, n_j, n_k),
                in_specs=[
                    pl.BlockSpec((tm, tk), lambda i, j, k: (i, k)),
                    pl.BlockSpec((tk, tn), lambda i, j, k: (k, j)),
                    pl.BlockSpec((1, tn), lambda i, j, k: (0, j)),
                ],
                out_specs=pl.BlockSpec((tm, tn), lambda i, j, k: (i, j)),
                scratch_shapes=[pltpu.VMEM((tm, tn), jnp.float32)],
            ),
            compiler_params=compiler_params,
            cost_estimate=cost,
        )(x_p, w_p, b_p)

    return out[:B, :dout]


if __name__ == "__main__":
    # ---- default shapes consistent with the module: batch=8, in=32, out=16 ----
    B, Din, Dout = 8, 32, 16
    key = jax.random.PRNGKey(0)
    kx, kw, kb = jax.random.split(key, 3)

    # Deterministic init mimicking nn.Linear's uniform(-1/sqrt(in), 1/sqrt(in)).
    bound = 1.0 / jnp.sqrt(jnp.float32(Din))
    w = jax.random.uniform(kw, (Dout, Din), jnp.float32, -bound, bound)  # [out, in]
    b = jax.random.uniform(kb, (Dout,), jnp.float32, -bound, bound)
    x = jax.random.normal(kx, (B, Din), jnp.float32)

    w_p, b_p = prepare_linear_params(w, b)          # one-time weight prep
    y = linear_forward(x, w_p, b_p, dout=Dout)
    y = jax.block_until_ready(y)

    y_ref_f32 = x @ w.T + b
    y_ref_bf16 = (
        x.astype(jnp.bfloat16).astype(jnp.float32)
        @ w.T.astype(jnp.bfloat16).astype(jnp.float32)
        + b
    )
    assert y.shape == (B, Dout)
    assert jnp.allclose(y, y_ref_bf16, atol=1e-5, rtol=1e-5)
    assert jnp.allclose(y, y_ref_f32, atol=2e-2, rtol=2e-2)

    # ---- second check: exercises the K-reduction (3-D grid) path + odd dims ----
    B2, Din2, Dout2 = 272, 1536, 520
    k2x, k2w, k2b = jax.random.split(jax.random.PRNGKey(1), 3)
    bound2 = 1.0 / jnp.sqrt(jnp.float32(Din2))
    w2 = jax.random.uniform(k2w, (Dout2, Din2), jnp.float32, -bound2, bound2)
    b2 = jax.random.uniform(k2b, (Dout2,), jnp.float32, -bound2, bound2)
    x2 = jax.random.normal(k2x, (B2, Din2), jnp.float32)

    w2_p, b2_p = prepare_linear_params(w2, b2)
    y2 = linear_forward(x2, w2_p, b2_p, dout=Dout2)
    y2 = jax.block_until_ready(y2)

    y2_ref_bf16 = (
        x2.astype(jnp.bfloat16).astype(jnp.float32)
        @ w2.T.astype(jnp.bfloat16).astype(jnp.float32)
        + b2
    )
    y2_ref_f32 = x2 @ w2.T + b2
    assert y2.shape == (B2, Dout2)
    assert jnp.allclose(y2, y2_ref_bf16, atol=5e-3, rtol=5e-3)
    assert jnp.allclose(y2, y2_ref_f32, atol=5e-2, rtol=5e-2)

    print("KERNEL_OK")
</pallas_src>

<mosaic_0001>
module attributes {stable_mosaic.version = 11 : i64} {
  func.func @_linear_kernel_single_k(%arg0: i32, %arg1: i32, %arg2: memref<16x128xbf16, #tpu.memory_space<vmem>>, %arg3: memref<128x128xbf16, #tpu.memory_space<vmem>>, %arg4: memref<1x128xf32, #tpu.memory_space<vmem>>, %arg5: memref<16x128xf32, #tpu.memory_space<vmem>>) attributes {dimension_semantics = [#tpu.dimension_semantics<parallel>, #tpu.dimension_semantics<parallel>], iteration_bounds = array<i64: 1, 1>, scalar_prefetch = 0 : i64, scratch_operands = 0 : i64, tpu.core_type = #tpu.core_type<tc>, window_params = [{transform_indices = @transform_0, window_bounds = array<i64: 16, 128>}, {transform_indices = @transform_1, window_bounds = array<i64: 128, 128>}, {transform_indices = @transform_2, window_bounds = array<i64: 1, 128>}, {transform_indices = @transform_3, window_bounds = array<i64: 16, 128>}]} {
    %c0 = arith.constant 0 : index
    %c0_0 = arith.constant 0 : index
    %0 = vector.load %arg2[%c0, %c0_0] : memref<16x128xbf16, #tpu.memory_space<vmem>>, vector<16x128xbf16>
    %c0_1 = arith.constant 0 : index
    %c0_2 = arith.constant 0 : index
    %1 = vector.load %arg3[%c0_1, %c0_2] : memref<128x128xbf16, #tpu.memory_space<vmem>>, vector<128x128xbf16>
    %cst = arith.constant dense<0.000000e+00> : vector<16x128xf32>
    %2 = tpu.matmul %0, %1, %cst {dimension_numbers = #tpu.dot_dimension_numbers<[1], [0], [0], [1], [0, 0, 1, 1], [], []>} : vector<16x128xbf16>, vector<128x128xbf16>, vector<16x128xf32> -> vector<16x128xf32>
    %c0_3 = arith.constant 0 : index
    %c0_4 = arith.constant 0 : index
    %3 = vector.load %arg4[%c0_3, %c0_4] : memref<1x128xf32, #tpu.memory_space<vmem>>, vector<1x128xf32>
    %4 = vector.broadcast %3 : vector<1x128xf32> to vector<16x128xf32>
    %5 = arith.addf %2, %4 : vector<16x128xf32>
    %c0_5 = arith.constant 0 : index
    %c0_6 = arith.constant 0 : index
    %6 = vector.load %arg5[%c0_5, %c0_6] : memref<16x128xf32, #tpu.memory_space<vmem>>, vector<16x128xf32>
    tpu.vector_store %arg5[%c0_5, %c0_6], %5 {strides = array<i32>} : memref<16x128xf32, #tpu.memory_space<vmem>>, vector<16x128xf32>,
    return
  }
  func.func @transform_0(%arg0: i32, %arg1: i32) -> (i32, i32) {
    %c0_i32 = arith.constant 0 : i32
    %c0_i32_0 = arith.constant 0 : i32
    return %arg0, %c0_i32 : i32, i32
  }
  func.func @transform_1(%arg0: i32, %arg1: i32) -> (i32, i32) {
    %c0_i32 = arith.constant 0 : i32
    %c0_i32_0 = arith.constant 0 : i32
    return %c0_i32, %arg1 : i32, i32
  }
  func.func @transform_2(%arg0: i32, %arg1: i32) -> (i32, i32) {
    %c0_i32 = arith.constant 0 : i32
    %c0_i32_0 = arith.constant 0 : i32
    return %c0_i32, %arg1 : i32, i32
  }
  func.func @transform_3(%arg0: i32, %arg1: i32) -> (i32, i32) {
    %c0_i32 = arith.constant 0 : i32
    return %arg0, %arg1 : i32, i32
  }
}

</mosaic_0001>

<llo_original>
// kernel: linear_forward.1
$region0: #{linear_forward.1}
  #allocation0 [shape = 'u32[]', space=smem, size = 0x4, offset = 0x4, fixed_abs, tag = 'smem constant byte address 0x4 - core index']
  #allocation1 [shape = 'u32[72,128]{1,0:T(1,128)}', space=vmem, size = 0x9000, scoped, tag = 'internal scratch']
  %s0 = inlined_call_operand.vmem [shape: bf16[16,128], index: 0, kind: input, shape index: {}]
  %s1 = inlined_call_operand.hbm [shape: bf16[128,128], index: 1, kind: input, shape index: {}]
  %s2 = inlined_call_operand.vmem [shape: f32[1,128], index: 2, kind: input, shape index: {}]
  %s3 = inlined_call_operand.vmem [shape: f32[16,128], index: 3, kind: output, shape index: {}]
  %s4 = sld [smem:[#allocation0]]
  $region26: #{linear_forward.1} parent=0
    _
  %s6 = ssub.s32 1, %s4
  %s7 = scalar_select 0, %s6, %s4
  $region1: #{linear_forward.1} parent=0
    #allocation2 [shape = 'u8[32768]{0}', space=vmem, size = 0x8000, scoped, tag = 'input window, operand 1, single buffered']
    #allocation3 [shape = 's32[1]{0}', space=sflag, size = 0x4, scoped, tag = 'scoped memory for linear_forward.1']
    %8 = vsyncpa [#allocation3], 0
    // Predicated region
    $region2: #{linear_forward.1} parent=1 // pred_check
      _
    $region3: #{linear_forward.1} parent=1 // pred_check_branch
      %10 = sbr.rel (0) target = $region5
    $region4: #{linear_forward.1} parent=1 // pred_region
      _
    $region5: #{linear_forward.1} parent=1 // pred_fallthru
      _
    // Predicated region
    $region6: #{linear_forward.1} parent=1 // pred_check
      _
    $region7: #{linear_forward.1} parent=1 // pred_check_branch
      %12 = sbr.rel (0) target = $region9
    $region8: #{linear_forward.1} parent=1 // pred_region
      %14 = vsyncadd [#allocation3], 0
      %s15 = sshll.u32 %s1, 4
      %s16 = int_to_ptr.hbm [resolvable:$true] %s15
      %s17 = sshll.u32 [#allocation2], 4
      %s18 = int_to_ptr.vmem [resolvable:$true] %s17
      %23 = dma.hbm_to_vmem [thread:$0]  %s16, 1024, %s18, [#allocation3], 64, 64, 4
    $region9: #{linear_forward.1} parent=1 // pred_fallthru
      _
    // Predicated region
    $region10: #{linear_forward.1} parent=1 // pred_check
      _
    $region11: #{linear_forward.1} parent=1 // pred_check_branch
      %25 = sbr.rel (0) target = $region13
    $region12: #{linear_forward.1} parent=1 // pred_region
      _
    $region13: #{linear_forward.1} parent=1 // pred_fallthru
      _
    // Predicated region
    $region14: #{linear_forward.1} parent=1 // pred_check
      _
    $region15: #{linear_forward.1} parent=1 // pred_check_branch
      %27 = sbr.rel (0) target = $region17
    $region16: #{linear_forward.1} parent=1 // pred_region
      %29 = dma.done [#allocation3], 1024
    $region17: #{linear_forward.1} parent=1 // pred_fallthru
      _
    %v30 = vld [vmem:[%s0] sm:$0xf]
    %v31 = vld [vmem:[%s0 + $0x4] sm:$0xf]
    %v32 = vld [vmem:[#allocation2] sm:$0xf]
    %v33 = vld [vmem:[#allocation2 + $0x4] sm:$0xf]
    %v34 = vld [vmem:[#allocation2 + $0x8] sm:$0xf]
    %v35 = vld [vmem:[#allocation2 + $0xc] sm:$0xf]
    %v36 = vld [vmem:[#allocation2 + $0x10] sm:$0xf]
    %v37 = vld [vmem:[#allocation2 + $0x14] sm:$0xf]
    %v38 = vld [vmem:[#allocation2 + $0x18] sm:$0xf]
    %v39 = vld [vmem:[#allocation2 + $0x1c] sm:$0xf]
    %v40 = vld [vmem:[#allocation2 + $0x20] sm:$0xf]
    %v41 = vld [vmem:[#allocation2 + $0x24] sm:$0xf]
    %v42 = vld [vmem:[#allocation2 + $0x28] sm:$0xf]
    %v43 = vld [vmem:[#allocation2 + $0x2c] sm:$0xf]
    %v44 = vld [vmem:[#allocation2 + $0x30] sm:$0xf]
    %v45 = vld [vmem:[#allocation2 + $0x34] sm:$0xf]
    %v46 = vld [vmem:[#allocation2 + $0x38] sm:$0xf]
    %v47 = vld [vmem:[#allocation2 + $0x3c] sm:$0xf]
    %v48 = vld [vmem:[%s2] sm:$0x1]
    %v50 = vperm.slane %v48, 0
    %v54 = vunpack.c.l.b16 %v30
    %v55 = vunpack.c.l.b16 %v31
    %v56 = vpack.c.b16 %v55, %v54
    %v74 = vunpack.c.l.b16 %v32
    %v75 = vunpack.c.l.b16 %v33
    %v76 = vunpack.c.l.b16 %v34
    %v77 = vunpack.c.l.b16 %v35
    %v78 = vunpack.c.l.b16 %v36
    %v79 = vunpack.c.l.b16 %v37
    %v80 = vunpack.c.l.b16 %v38
    %v81 = vunpack.c.l.b16 %v39
    %v82 = vunpack.c.l.b16 %v40
    %v83 = vunpack.c.l.b16 %v41
    %v84 = vunpack.c.l.b16 %v42
    %v85 = vunpack.c.l.b16 %v43
    %v86 = vunpack.c.l.b16 %v44
    %v87 = vunpack.c.l.b16 %v45
    %v88 = vunpack.c.l.b16 %v46
    %v89 = vunpack.c.l.b16 %v47
    %v90 = vpack.c.b16 %v75, %v74
    %v91 = vpack.c.b16 %v77, %v76
    %v92 = vpack.c.b16 %v79, %v78
    %v93 = vpack.c.b16 %v81, %v80
    %v94 = vpack.c.b16 %v83, %v82
    %v95 = vpack.c.b16 %v85, %v84
    %v96 = vpack.c.b16 %v87, %v86
    %v97 = vpack.c.b16 %v89, %v88
    %106 = vmatpush.bf16.msra.mxu0 %v97
    %107 = vmatpush.bf16.msra.mxu0 %v96
    %108 = vmatpush.bf16.msra.mxu0 %v95
    %109 = vmatpush.bf16.msra.mxu0 %v94
    %110 = vmatpush.bf16.msra.mxu0 %v93
    %111 = vmatpush.bf16.msra.mxu0 %v92
    %112 = vmatpush.bf16.msra.mxu0 %v91
    %113 = vmatpush.bf16.msra.mxu0 %v90
    %114 = vmatmul.bf16.gmra.mxu0 %v56
    %v115 = vpop.f32.mrf.mxu0
    %v116 = vadd.f32 %v50, %v115
    %v117 = vpop.f32.mrf.mxu0
    %v118 = vadd.f32 %v50, %v117
    %119 = vdwg.mxu0
    %120 = vst [vmem:[%s3] sm:$0xff] %v116
    %121 = vst [vmem:[%s3 + $0x8] sm:$0xff] %v118
    // Predicated region
    $region18: #{linear_forward.1} parent=1 // pred_check
      _
    $region19: #{linear_forward.1} parent=1 // pred_check_branch
      %123 = sbr.rel (0) target = $region21
    $region20: #{linear_forward.1} parent=1 // pred_region
      _
    $region21: #{linear_forward.1} parent=1 // pred_fallthru
      _
    // Predicated region
    $region22: #{linear_forward.1} parent=1 // pred_check
      _
    $region23: #{linear_forward.1} parent=1 // pred_check_branch
      %125 = sbr.rel (0) target = $region25
    $region24: #{linear_forward.1} parent=1 // pred_region
      _
    $region25: #{linear_forward.1} parent=1 // pred_fallthru
      _
    %126 = vsyncpa [#allocation3], 1

</llo_original>
